<compile_context>
chip_gen: v5e
topology: v5e:2x2
jax: 0.10.0
libtpu: 0.0.40
codegen_flags: <defaults>
</compile_context>

<pallas_src>
import functools

import jax
import jax.numpy as jnp
from jax.experimental import pallas as pl
from jax.experimental.pallas import tpu as pltpu


def mlp_kernel(x_ref, w1_ref, b1_ref, w2_ref, b2_ref, out_ref):
    """Fused forward for one batch tile.

    x_ref  : (TB, context)              int32  token indices
    w1_ref : (context*vocab, tanh)      bf16   embedding table folded into W1
    b1_ref : (1, tanh)                  f32    W1.bias + b1
    w2_ref : (tanh, vocab_pad)          bf16   W2 pre-transposed, lane-padded
    b2_ref : (1, vocab_pad)             f32    W2.bias + b2, lane-padded
    out_ref: (TB, vocab_pad)            f32    padded logits
    """
    tile_b, context = x_ref.shape
    k_dim = w1_ref.shape[0]              # context * vocab
    vocab = k_dim // context

    ids = x_ref[...]                                               # (TB, context) i32
    lane = jax.lax.broadcasted_iota(jnp.int32, (tile_b, k_dim), 1)

    # Single fused one-hot over all context slots: column c*vocab + ids[b, c].
    # The loop is `context` (=4) VPU compare+add passes; all MXU work is the one
    # matmul below (columns hit by different c are disjoint, so add == or).
    one_hot = jnp.zeros((tile_b, k_dim), jnp.bfloat16)
    for c in range(context):
        one_hot = one_hot + (lane == ids[:, c:c + 1] + c * vocab).astype(jnp.bfloat16)

    # Layer 1: one (TB, context*vocab) @ (context*vocab, tanh) MXU matmul, f32 acc.
    pre1 = jnp.dot(one_hot, w1_ref[...], preferred_element_type=jnp.float32)
    h = jnp.tanh(pre1 + b1_ref[...])                               # (TB, tanh) f32

    # Layer 2: (TB, tanh) @ (tanh, vocab_pad); weights pre-transposed offline.
    logits = jnp.dot(h.astype(jnp.bfloat16), w2_ref[...],
                     preferred_element_type=jnp.float32)           # (TB, vocab_pad)
    out_ref[...] = logits + b2_ref[...]


def prepare_params(C, W1, W1_bias, b1, W2, W2_bias, b2):
    """One-time static parameter prep (weights are static — hoisted off the hot path)."""
    vocab, embed = C.shape
    tanh_dim = W1.shape[0]
    context = W1.shape[1] // embed
    vocab_pad = pl.cdiv(vocab, 128) * 128                          # lane-dense out width

    # Fold C into W1: emb_c @ W1_c^T == one_hot_c @ (C @ W1_c^T); concat slots along K.
    w1_slots = (W1.reshape(tanh_dim, context, embed)
                  .transpose(1, 2, 0).astype(jnp.float32))          # (context, embed, tanh)
    w1_eff = jnp.einsum('ve,ceh->cvh', C.astype(jnp.float32), w1_slots)
    w1_eff = w1_eff.reshape(context * vocab, tanh_dim).astype(jnp.bfloat16)

    bias1 = (W1_bias + b1).reshape(1, tanh_dim).astype(jnp.float32)

    # Pre-transposed, lane-padded W2 so the in-kernel matmul is plain (M,K)@(K,N).
    w2_t = jnp.zeros((tanh_dim, vocab_pad), jnp.bfloat16).at[:, :vocab].set(
        W2.T.astype(jnp.bfloat16))
    bias2 = jnp.zeros((1, vocab_pad), jnp.float32).at[0, :vocab].set(
        (W2_bias + b2).astype(jnp.float32))
    return w1_eff, bias1, w2_t, bias2


def _pick_tile_b(B):
    """Batch tile: multiple of 8 (sublane), <=256 (fills MXU M), >=2 grid steps if B>=16."""
    if B <= 8 or B % 8 != 0:
        return B                         # single tile; block == full array, always legal
    cap = min(256, max(8, B // 2))       # >=2 grid steps so v7x's 2nd TensorCore gets work
    for t in range(cap - cap % 8, 7, -8):
        if B % t == 0:
            return t
    return B


def _padded_block_bytes(shape, dtype):
    dims = list(shape)
    dims[-1] = pl.cdiv(dims[-1], 128) * 128
    if len(dims) >= 2:
        dims[-2] = pl.cdiv(dims[-2], 8) * 8
    n = 1
    for d in dims:
        n *= d
    return n * jnp.dtype(dtype).itemsize


def _const_spec(shape):
    """Grid-invariant weight block: fetched once, single-buffered to halve resident bytes."""
    idx = lambda i: (0,) * len(shape)
    try:
        return pl.BlockSpec(shape, idx, pipeline_mode=pl.Buffered(1))
    except (AttributeError, TypeError):   # older jax without pipeline_mode / Buffered
        return pl.BlockSpec(shape, idx)


@functools.partial(jax.jit, static_argnames=("vocab_size",))
def mlp_forward(x, params, *, vocab_size):
    """x: (B, context) int32 token indices -> (B, vocab_size) f32 logits."""
    w1_eff, bias1, w2_t, bias2 = params
    B, context = x.shape
    k_dim, tanh_dim = w1_eff.shape
    vocab_pad = w2_t.shape[1]

    tile_b = _pick_tile_b(B)
    grid = (B // tile_b,)

    # VMEM budget from the actual (8,128)-padded blocks (x2 pipelining headroom + slack).
    vmem_bytes = 2 * (
        _padded_block_bytes((tile_b, context), jnp.int32)
        + _padded_block_bytes((k_dim, tanh_dim), jnp.bfloat16)
        + _padded_block_bytes((1, tanh_dim), jnp.float32)
        + _padded_block_bytes((tanh_dim, vocab_pad), jnp.bfloat16)
        + _padded_block_bytes((1, vocab_pad), jnp.float32)
        + _padded_block_bytes((tile_b, vocab_pad), jnp.float32)
    ) + (8 << 20)

    out_padded = pl.pallas_call(
        mlp_kernel,
        out_shape=jax.ShapeDtypeStruct((B, vocab_pad), jnp.float32),
        grid_spec=pltpu.PrefetchScalarGridSpec(
            num_scalar_prefetch=0,
            grid=grid,
            in_specs=[
                pl.BlockSpec((tile_b, context), lambda i: (i, 0)),
                _const_spec((k_dim, tanh_dim)),
                _const_spec((1, tanh_dim)),
                _const_spec((tanh_dim, vocab_pad)),
                _const_spec((1, vocab_pad)),
            ],
            out_specs=pl.BlockSpec((tile_b, vocab_pad), lambda i: (i, 0)),
        ),
        compiler_params=pltpu.CompilerParams(
            dimension_semantics=("parallel",),
            vmem_limit_bytes=int(vmem_bytes)),
    )(x, w1_eff, bias1, w2_t, bias2)

    # Strip lane padding back to the true vocab (a fused downstream loss should instead
    # consume the padded buffer directly — padded columns are exactly 0.0).
    return out_padded[:, :vocab_size]


if __name__ == "__main__":
    # Small deterministic config consistent with the module's __init__.
    vocab_size = 32
    context_size = 4
    embedding_dim = 8
    tanh_dim = 64
    batch = 8

    key = jax.random.PRNGKey(0)
    k_x, k_C, k_W1, k_W1b, k_b1, k_W2, k_W2b, k_b2 = jax.random.split(key, 8)

    x = jax.random.randint(k_x, (batch, context_size), 0, vocab_size, dtype=jnp.int32)
    C = jax.random.normal(k_C, (vocab_size, embedding_dim), dtype=jnp.float32)
    W1 = jax.random.normal(k_W1, (tanh_dim, context_size * embedding_dim),
                           dtype=jnp.float32) * 0.1
    W1_bias = jax.random.normal(k_W1b, (tanh_dim,), dtype=jnp.float32) * 0.1
    b1 = jax.random.normal(k_b1, (tanh_dim,), dtype=jnp.float32)
    W2 = jax.random.normal(k_W2, (vocab_size, tanh_dim), dtype=jnp.float32) * 0.1
    W2_bias = jax.random.normal(k_W2b, (vocab_size,), dtype=jnp.float32) * 0.1
    b2 = jax.random.normal(k_b2, (vocab_size,), dtype=jnp.float32)

    params = prepare_params(C, W1, W1_bias, b1, W2, W2_bias, b2)   # one-time static prep
    logits = mlp_forward(x, params, vocab_size=vocab_size)
    logits = jax.block_until_ready(logits)

    # Pure-JAX f32 reference. Kernel uses bf16 MXU operands (f32 accumulate), so
    # tolerances are loosened to the expected ~1e-2 bf16 rounding level.
    emb_ref = C[x].reshape(batch, context_size * embedding_dim)
    h_ref = jnp.tanh(emb_ref @ W1.T + W1_bias + b1)
    logits_ref = h_ref @ W2.T + W2_bias + b2
    assert logits.shape == (batch, vocab_size)
    assert jnp.allclose(logits, logits_ref, atol=1e-1, rtol=1e-1), (
        float(jnp.max(jnp.abs(logits - logits_ref))))

    print("KERNEL_OK")
</pallas_src>

<mosaic_0001>
module attributes {stable_mosaic.version = 11 : i64} {
  func.func @mlp_kernel(%arg0: i32, %arg1: memref<8x4xi32, #tpu.memory_space<vmem>>, %arg2: memref<128x64xbf16, #tpu.memory_space<vmem>>, %arg3: memref<1x64xf32, #tpu.memory_space<vmem>>, %arg4: memref<64x128xbf16, #tpu.memory_space<vmem>>, %arg5: memref<1x128xf32, #tpu.memory_space<vmem>>, %arg6: memref<8x128xf32, #tpu.memory_space<vmem>>) attributes {dimension_semantics = [#tpu.dimension_semantics<parallel>], iteration_bounds = array<i64: 1>, scalar_prefetch = 0 : i64, scratch_operands = 0 : i64, tpu.core_type = #tpu.core_type<tc>, window_params = [{transform_indices = @transform_0, window_bounds = array<i64: 8, 4>}, {pipeline_mode = #tpu.pipeline_mode<synchronous>, transform_indices = @transform_1, window_bounds = array<i64: 128, 64>}, {pipeline_mode = #tpu.pipeline_mode<synchronous>, transform_indices = @transform_2, window_bounds = array<i64: 1, 64>}, {pipeline_mode = #tpu.pipeline_mode<synchronous>, transform_indices = @transform_3, window_bounds = array<i64: 64, 128>}, {pipeline_mode = #tpu.pipeline_mode<synchronous>, transform_indices = @transform_4, window_bounds = array<i64: 1, 128>}, {transform_indices = @transform_5, window_bounds = array<i64: 8, 128>}]} {
    %c0 = arith.constant 0 : index
    %c0_0 = arith.constant 0 : index
    %0 = vector.load %arg1[%c0, %c0_0] : memref<8x4xi32, #tpu.memory_space<vmem>>, vector<8x4xi32>
    %1 = tpu.iota {dimensions = array<i32: 1>} : vector<8x128xi32>
    %cst = arith.constant 0.000000e+00 : bf16
    %2 = vector.broadcast %cst : bf16 to vector<8x128xbf16>
    %3 = vector.extract_strided_slice %0 {offsets = [0, 0], sizes = [8, 1], strides = [1, 1]} : vector<8x4xi32> to vector<8x1xi32>
    %c0_i32 = arith.constant 0 : i32
    %4 = vector.broadcast %c0_i32 : i32 to vector<8x1xi32>
    %5 = arith.addi %3, %4 : vector<8x1xi32>
    %6 = vector.broadcast %5 : vector<8x1xi32> to vector<8x128xi32>
    %7 = arith.cmpi eq, %1, %6 : vector<8x128xi32>
    %8 = arith.extui %7 : vector<8x128xi1> to vector<8x128xi32>
    %9 = arith.sitofp %8 : vector<8x128xi32> to vector<8x128xf32>
    %10 = arith.truncf %9 : vector<8x128xf32> to vector<8x128xbf16>
    %11 = arith.addf %2, %10 : vector<8x128xbf16>
    %12 = vector.extract_strided_slice %0 {offsets = [0, 1], sizes = [8, 1], strides = [1, 1]} : vector<8x4xi32> to vector<8x1xi32>
    %c32_i32 = arith.constant 32 : i32
    %13 = vector.broadcast %c32_i32 : i32 to vector<8x1xi32>
    %14 = arith.addi %12, %13 : vector<8x1xi32>
    %15 = vector.broadcast %14 : vector<8x1xi32> to vector<8x128xi32>
    %16 = arith.cmpi eq, %1, %15 : vector<8x128xi32>
    %17 = arith.extui %16 : vector<8x128xi1> to vector<8x128xi32>
    %18 = arith.sitofp %17 : vector<8x128xi32> to vector<8x128xf32>
    %19 = arith.truncf %18 : vector<8x128xf32> to vector<8x128xbf16>
    %20 = arith.addf %11, %19 : vector<8x128xbf16>
    %21 = vector.extract_strided_slice %0 {offsets = [0, 2], sizes = [8, 1], strides = [1, 1]} : vector<8x4xi32> to vector<8x1xi32>
    %c64_i32 = arith.constant 64 : i32
    %22 = vector.broadcast %c64_i32 : i32 to vector<8x1xi32>
    %23 = arith.addi %21, %22 : vector<8x1xi32>
    %24 = vector.broadcast %23 : vector<8x1xi32> to vector<8x128xi32>
    %25 = arith.cmpi eq, %1, %24 : vector<8x128xi32>
    %26 = arith.extui %25 : vector<8x128xi1> to vector<8x128xi32>
    %27 = arith.sitofp %26 : vector<8x128xi32> to vector<8x128xf32>
    %28 = arith.truncf %27 : vector<8x128xf32> to vector<8x128xbf16>
    %29 = arith.addf %20, %28 : vector<8x128xbf16>
    %30 = vector.extract_strided_slice %0 {offsets = [0, 3], sizes = [8, 1], strides = [1, 1]} : vector<8x4xi32> to vector<8x1xi32>
    %c96_i32 = arith.constant 96 : i32
    %31 = vector.broadcast %c96_i32 : i32 to vector<8x1xi32>
    %32 = arith.addi %30, %31 : vector<8x1xi32>
    %33 = vector.broadcast %32 : vector<8x1xi32> to vector<8x128xi32>
    %34 = arith.cmpi eq, %1, %33 : vector<8x128xi32>
    %35 = arith.extui %34 : vector<8x128xi1> to vector<8x128xi32>
    %36 = arith.sitofp %35 : vector<8x128xi32> to vector<8x128xf32>
    %37 = arith.truncf %36 : vector<8x128xf32> to vector<8x128xbf16>
    %38 = arith.addf %29, %37 : vector<8x128xbf16>
    %c0_1 = arith.constant 0 : index
    %c0_2 = arith.constant 0 : index
    %39 = vector.load %arg2[%c0_1, %c0_2] : memref<128x64xbf16, #tpu.memory_space<vmem>>, vector<128x64xbf16>
    %cst_3 = arith.constant dense<0.000000e+00> : vector<8x64xf32>
    %40 = tpu.matmul %38, %39, %cst_3 {dimension_numbers = #tpu.dot_dimension_numbers<[1], [0], [0], [1], [0, 0, 1, 1], [], []>} : vector<8x128xbf16>, vector<128x64xbf16>, vector<8x64xf32> -> vector<8x64xf32>
    %c0_4 = arith.constant 0 : index
    %c0_5 = arith.constant 0 : index
    %41 = vector.load %arg3[%c0_4, %c0_5] : memref<1x64xf32, #tpu.memory_space<vmem>>, vector<1x64xf32>
    %42 = vector.broadcast %41 : vector<1x64xf32> to vector<8x64xf32>
    %43 = arith.addf %40, %42 : vector<8x64xf32>
    %44 = math.tanh %43 : vector<8x64xf32>
    %45 = arith.truncf %44 : vector<8x64xf32> to vector<8x64xbf16>
    %c0_6 = arith.constant 0 : index
    %c0_7 = arith.constant 0 : index
    %46 = vector.load %arg4[%c0_6, %c0_7] : memref<64x128xbf16, #tpu.memory_space<vmem>>, vector<64x128xbf16>
    %cst_8 = arith.constant dense<0.000000e+00> : vector<8x128xf32>
    %47 = tpu.matmul %45, %46, %cst_8 {dimension_numbers = #tpu.dot_dimension_numbers<[1], [0], [0], [1], [0, 0, 1, 1], [], []>} : vector<8x64xbf16>, vector<64x128xbf16>, vector<8x128xf32> -> vector<8x128xf32>
    %c0_9 = arith.constant 0 : index
    %c0_10 = arith.constant 0 : index
    %48 = vector.load %arg5[%c0_9, %c0_10] : memref<1x128xf32, #tpu.memory_space<vmem>>, vector<1x128xf32>
    %49 = vector.broadcast %48 : vector<1x128xf32> to vector<8x128xf32>
    %50 = arith.addf %47, %49 : vector<8x128xf32>
    %c0_11 = arith.constant 0 : index
    %c0_12 = arith.constant 0 : index
    %51 = vector.load %arg6[%c0_11, %c0_12] : memref<8x128xf32, #tpu.memory_space<vmem>>, vector<8x128xf32>
    tpu.vector_store %arg6[%c0_11, %c0_12], %50 {strides = array<i32>} : memref<8x128xf32, #tpu.memory_space<vmem>>, vector<8x128xf32>,
    return
  }
  func.func @transform_0(%arg0: i32) -> (i32, i32) {
    %c0_i32 = arith.constant 0 : i32
    %c0_i32_0 = arith.constant 0 : i32
    return %arg0, %c0_i32 : i32, i32
  }
  func.func @transform_1(%arg0: i32) -> (i32, i32) {
    %c0_i32 = arith.constant 0 : i32
    %c0_i32_0 = arith.constant 0 : i32
    %c0_i32_1 = arith.constant 0 : i32
    return %c0_i32, %c0_i32_0 : i32, i32
  }
  func.func @transform_2(%arg0: i32) -> (i32, i32) {
    %c0_i32 = arith.constant 0 : i32
    %c0_i32_0 = arith.constant 0 : i32
    %c0_i32_1 = arith.constant 0 : i32
    return %c0_i32, %c0_i32_0 : i32, i32
  }
  func.func @transform_3(%arg0: i32) -> (i32, i32) {
    %c0_i32 = arith.constant 0 : i32
    %c0_i32_0 = arith.constant 0 : i32
    %c0_i32_1 = arith.constant 0 : i32
    return %c0_i32, %c0_i32_0 : i32, i32
  }
  func.func @transform_4(%arg0: i32) -> (i32, i32) {
    %c0_i32 = arith.constant 0 : i32
    %c0_i32_0 = arith.constant 0 : i32
    %c0_i32_1 = arith.constant 0 : i32
    return %c0_i32, %c0_i32_0 : i32, i32
  }
  func.func @transform_5(%arg0: i32) -> (i32, i32) {
    %c0_i32 = arith.constant 0 : i32
    %c0_i32_0 = arith.constant 0 : i32
    return %arg0, %c0_i32 : i32, i32
  }
}

</mosaic_0001>

<llo_original>
// kernel: mlp_forward.1
$region0: #{mlp_forward.1}
  #allocation0 [shape = 'u32[]', space=smem, size = 0x4, offset = 0x4, fixed_abs, tag = 'smem constant byte address 0x4 - core index']
  #allocation1 [shape = 'u32[72,128]{1,0:T(1,128)}', space=vmem, size = 0x9000, scoped, tag = 'internal scratch']
  %s0 = inlined_call_operand.vmem [shape: s32[8,4], index: 0, kind: input, shape index: {}]
  %s1 = inlined_call_operand.vmem [shape: bf16[128,64], index: 1, kind: input, shape index: {}]
  %s2 = inlined_call_operand.vmem [shape: f32[1,64], index: 2, kind: input, shape index: {}]
  %s3 = inlined_call_operand.vmem [shape: bf16[64,128], index: 3, kind: input, shape index: {}]
  %s4 = inlined_call_operand.vmem [shape: f32[1,128], index: 4, kind: input, shape index: {}]
  %s5 = inlined_call_operand.hbm [shape: f32[8,128], index: 5, kind: output, shape index: {}]
  %s6 = sld [smem:[#allocation0]]
  $region30: #{mlp_forward.1} parent=0
    _
  %s8 = ssub.s32 1, %s6
  %s9 = scalar_select 0, %s8, %s6
  $region1: #{mlp_forward.1} parent=0
    #allocation2 [shape = 'u8[4096]{0}', space=vmem, size = 0x1000, scoped, tag = 'output window, operand 0, single buffered']
    #allocation3 [shape = 's32[1]{0}', space=sflag, size = 0x4, scoped, tag = 'scoped memory for mlp_forward.1']
    %10 = vsyncpa [#allocation3], 0
    // Predicated region
    $region2: #{mlp_forward.1} parent=1 // pred_check
      _
    $region3: #{mlp_forward.1} parent=1 // pred_check_branch
      %12 = sbr.rel (0) target = $region5
    $region4: #{mlp_forward.1} parent=1 // pred_region
      _
    $region5: #{mlp_forward.1} parent=1 // pred_fallthru
      _
    // Predicated region
    $region6: #{mlp_forward.1} parent=1 // pred_check
      _
    $region7: #{mlp_forward.1} parent=1 // pred_check_branch
      %14 = sbr.rel (0) target = $region9
    $region8: #{mlp_forward.1} parent=1 // pred_region
      _
    $region9: #{mlp_forward.1} parent=1 // pred_fallthru
      _
    // Predicated region
    $region10: #{mlp_forward.1} parent=1 // pred_check
      _
    $region11: #{mlp_forward.1} parent=1 // pred_check_branch
      %16 = sbr.rel (0) target = $region13
    $region12: #{mlp_forward.1} parent=1 // pred_region
      _
    $region13: #{mlp_forward.1} parent=1 // pred_fallthru
      _
    // Predicated region
    $region14: #{mlp_forward.1} parent=1 // pred_check
      _
    $region15: #{mlp_forward.1} parent=1 // pred_check_branch
      %18 = sbr.rel (0) target = $region17
    $region16: #{mlp_forward.1} parent=1 // pred_region
      _
    $region17: #{mlp_forward.1} parent=1 // pred_fallthru
      _
    // Predicated region
    $region18: #{mlp_forward.1} parent=1 // pred_check
      _
    $region19: #{mlp_forward.1} parent=1 // pred_check_branch
      %20 = sbr.rel (0) target = $region21
    $region20: #{mlp_forward.1} parent=1 // pred_region
      _
    $region21: #{mlp_forward.1} parent=1 // pred_fallthru
      _
    %v22 = vld [vmem:[%s0] sm:$0xff]
    %v23 = vlaneseq
    %v24 = vand.u32 %v23, 127
    %25 = vset.pattern.permute.xlu0 0
    %26 = vperm.xlu0 %25, %v22
    %v27 = vpop.permute.xlu0 %26
    %vm28 = vcmp.eq.s32.totalorder %v24, %v27
    %v29 = vsel %vm28, 1, 0
    %v30 = vcvt.s32.f32 %v29
    %v31 = vpack.c.bf16 %v30, %v30
    %v32 = vunpack.c.l.bf16 %v31
    %v33 = vadd.f32 %v32, 0.0
    %v34 = vpack.c.bf16 %v33, %v33
    %v35 = vadd.s32 %v22, 32
    %36 = vset.pattern.permute.xlu0 1
    %37 = vperm.xlu0 %36, %v35
    %v38 = vpop.permute.xlu0 %37
    %vm39 = vcmp.eq.s32.totalorder %v24, %v38
    %v40 = vsel %vm39, 1, 0
    %v41 = vcvt.s32.f32 %v40
    %v42 = vpack.c.bf16 %v41, %v41
    %v43 = vunpack.c.l.bf16 %v34
    %v44 = vunpack.c.l.bf16 %v42
    %v45 = vadd.f32 %v43, %v44
    %v46 = vpack.c.bf16 %v45, %v45
    %v47 = vadd.s32 %v22, 64
    %48 = vset.pattern.permute.xlu0 2
    %49 = vperm.xlu0 %48, %v47
    %v50 = vpop.permute.xlu0 %49
    %vm51 = vcmp.eq.s32.totalorder %v24, %v50
    %v52 = vsel %vm51, 1, 0
    %v53 = vcvt.s32.f32 %v52
    %v54 = vpack.c.bf16 %v53, %v53
    %v55 = vunpack.c.l.bf16 %v46
    %v56 = vunpack.c.l.bf16 %v54
    %v57 = vadd.f32 %v55, %v56
    %v58 = vpack.c.bf16 %v57, %v57
    %v59 = vadd.s32 %v22, 96
    %60 = vset.pattern.permute.xlu0 3
    %61 = vperm.xlu0 %60, %v59
    %v62 = vpop.permute.xlu0 %61
    %vm63 = vcmp.eq.s32.totalorder %v24, %v62
    %v64 = vsel %vm63, 1, 0
    %v65 = vcvt.s32.f32 %v64
    %v66 = vpack.c.bf16 %v65, %v65
    %v67 = vunpack.c.l.bf16 %v58
    %v68 = vunpack.c.l.bf16 %v66
    %v69 = vadd.f32 %v67, %v68
    %v70 = vpack.c.bf16 %v69, %v69
    %v71 = vld [vmem:[%s1] sm:$0xf]
    %v72 = vld [vmem:[%s1 + $0x4] sm:$0xf]
    %v73 = vld [vmem:[%s1 + $0x8] sm:$0xf]
    %v74 = vld [vmem:[%s1 + $0xc] sm:$0xf]
    %v75 = vld [vmem:[%s1 + $0x10] sm:$0xf]
    %v76 = vld [vmem:[%s1 + $0x14] sm:$0xf]
    %v77 = vld [vmem:[%s1 + $0x18] sm:$0xf]
    %v78 = vld [vmem:[%s1 + $0x1c] sm:$0xf]
    %v79 = vld [vmem:[%s1 + $0x20] sm:$0xf]
    %v80 = vld [vmem:[%s1 + $0x24] sm:$0xf]
    %v81 = vld [vmem:[%s1 + $0x28] sm:$0xf]
    %v82 = vld [vmem:[%s1 + $0x2c] sm:$0xf]
    %v83 = vld [vmem:[%s1 + $0x30] sm:$0xf]
    %v84 = vld [vmem:[%s1 + $0x34] sm:$0xf]
    %v85 = vld [vmem:[%s1 + $0x38] sm:$0xf]
    %v86 = vld [vmem:[%s1 + $0x3c] sm:$0xf]
    %v87 = vld [vmem:[%s2] sm:$0x1]
    %v89 = vperm.slane %v87, 0
    %v107 = vunpack.c.l.b16 %v71
    %v108 = vunpack.c.l.b16 %v72
    %v109 = vunpack.c.l.b16 %v73
    %v110 = vunpack.c.l.b16 %v74
    %v111 = vunpack.c.l.b16 %v75
    %v112 = vunpack.c.l.b16 %v76
    %v113 = vunpack.c.l.b16 %v77
    %v114 = vunpack.c.l.b16 %v78
    %v115 = vunpack.c.l.b16 %v79
    %v116 = vunpack.c.l.b16 %v80
    %v117 = vunpack.c.l.b16 %v81
    %v118 = vunpack.c.l.b16 %v82
    %v119 = vunpack.c.l.b16 %v83
    %v120 = vunpack.c.l.b16 %v84
    %v121 = vunpack.c.l.b16 %v85
    %v122 = vunpack.c.l.b16 %v86
    %v123 = vpack.c.b16 %v108, %v107
    %v124 = vpack.c.b16 %v110, %v109
    %v125 = vpack.c.b16 %v112, %v111
    %v126 = vpack.c.b16 %v114, %v113
    %v127 = vpack.c.b16 %v116, %v115
    %v128 = vpack.c.b16 %v118, %v117
    %v129 = vpack.c.b16 %v120, %v119
    %v130 = vpack.c.b16 %v122, %v121
    %139 = vmatpush.bf16.msra.mxu0 %v130
    %140 = vmatpush.bf16.msra.mxu0 %v129
    %141 = vmatpush.bf16.msra.mxu0 %v128
    %142 = vmatpush.bf16.msra.mxu0 %v127
    %143 = vmatpush.bf16.msra.mxu0 %v126
    %144 = vmatpush.bf16.msra.mxu0 %v125
    %145 = vmatpush.bf16.msra.mxu0 %v124
    %146 = vmatpush.bf16.msra.mxu0 %v123
    %147 = vmatmul.bf16.gmra.mxu0 %v70
    %v148 = vpop.f32.mrf.mxu0
    %v149 = vadd.f32 %v89, %v148
    %v150 = vpop.f32.mrf.mxu0
    %151 = vdwg.mxu0
    %v152 = vtanh.pop %v149
    %v153 = vpack.c.bf16 %v152, %v152
    %v154 = vld [vmem:[%s3] sm:$0xf]
    %v155 = vld [vmem:[%s3 + $0x4] sm:$0xf]
    %v156 = vld [vmem:[%s3 + $0x8] sm:$0xf]
    %v157 = vld [vmem:[%s3 + $0xc] sm:$0xf]
    %v158 = vld [vmem:[%s3 + $0x10] sm:$0xf]
    %v159 = vld [vmem:[%s3 + $0x14] sm:$0xf]
    %v160 = vld [vmem:[%s3 + $0x18] sm:$0xf]
    %v161 = vld [vmem:[%s3 + $0x1c] sm:$0xf]
    %v162 = vld [vmem:[%s4] sm:$0x1]
    %v164 = vperm.slane %v162, 0
    %v174 = vunpack.c.l.b16 %v154
    %v175 = vunpack.c.l.b16 %v155
    %v176 = vunpack.c.l.b16 %v156
    %v177 = vunpack.c.l.b16 %v157
    %v178 = vunpack.c.l.b16 %v158
    %v179 = vunpack.c.l.b16 %v159
    %v180 = vunpack.c.l.b16 %v160
    %v181 = vunpack.c.l.b16 %v161
    %v182 = vpack.c.b16 %v175, %v174
    %v183 = vpack.c.b16 %v177, %v176
    %v184 = vpack.c.b16 %v179, %v178
    %v185 = vpack.c.b16 %v181, %v180
    %vm190 = vcmask 523264
    %v192 = vsel %vm190, %v153, 0
    %194 = vmatpush.bf16.msra.mxu0 0
    %195 = vmatpush.bf16.msra.mxu0 0
    %196 = vmatpush.bf16.msra.mxu0 0
    %197 = vmatpush.bf16.msra.mxu0 0
    %198 = vmatpush.bf16.msra.mxu0 %v185
    %199 = vmatpush.bf16.msra.mxu0 %v184
    %200 = vmatpush.bf16.msra.mxu0 %v183
    %201 = vmatpush.bf16.msra.mxu0 %v182
    %202 = vmatmul.bf16.gmra.mxu0 %v192
    %v203 = vpop.f32.mrf.mxu0
    %v204 = vadd.f32 %v164, %v203
    %v205 = vpop.f32.mrf.mxu0
    %206 = vdwg.mxu0
    %207 = vst [vmem:[#allocation2] sm:$0xff] %v204
    // Predicated region
    $region22: #{mlp_forward.1} parent=1 // pred_check
      _
    $region23: #{mlp_forward.1} parent=1 // pred_check_branch
      %209 = sbr.rel (0) target = $region25
    $region24: #{mlp_forward.1} parent=1 // pred_region
      %211 = vsyncadd [#allocation3], 0
      %s213 = sshll.u32 [#allocation2], 4
      %s214 = int_to_ptr.vmem [resolvable:$true] %s213
      %s215 = sshll.u32 %s5, 4
      %s216 = int_to_ptr.hbm [resolvable:$true] %s215
      %218 = dma.vmem_to_hbm [thread:$0]  %s214, 128, %s216, [#allocation3]
    $region25: #{mlp_forward.1} parent=1 // pred_fallthru
      _
    // Predicated region
    $region26: #{mlp_forward.1} parent=1 // pred_check
      _
    $region27: #{mlp_forward.1} parent=1 // pred_check_branch
      %220 = sbr.rel (0) target = $region29
    $region28: #{mlp_forward.1} parent=1 // pred_region
      %222 = dma.done [#allocation3], 128
    $region29: #{mlp_forward.1} parent=1 // pred_fallthru
      _
    %223 = vsyncpa [#allocation3], 1

</llo_original>
